<compile_context>
chip_gen: v5e
topology: v5e:2x2
jax: 0.10.0
libtpu: 0.0.40
codegen_flags: <defaults>
</compile_context>

<pallas_src>
import functools
from math import sqrt

import jax
import jax.numpy as jnp
from jax.experimental import pallas as pl
from jax.experimental.pallas import tpu as pltpu

LANE = 128                      # lane width (last-dim tiling unit)
BF16_SUBLANE = 16               # bf16 packs 16 rows per vreg sublane group
MAX_TILE_B = 1024               # batch-tile cap (rows); grid steps cost ~0.35 us each
VMEM_BUDGET = 48 * 1024 * 1024  # conservative per-TC budget (v7x: 64 MiB per TC)


def _round_up(x, m):
    return ((x + m - 1) // m) * m


# --------------------------------------------------------------------------- #
# Kernel
# --------------------------------------------------------------------------- #
def _fused_mlp_kernel(*refs, num_layers):
    """Fused MLP over one batch tile.

    refs = (x_ref, w0_ref, b0_ref, ..., w{L-1}_ref, b{L-1}_ref, o_ref)
      x_ref : (TILE_B, f0)            f32   (cast to bf16 in-kernel)
      w_ref : (fin_pad, fout_pad)     bf16  (pre-transposed: y = x @ W)
      b_ref : (1, fout_pad)           f32
      o_ref : (TILE_B, fL_pad)        bf16  (lane-dense, padded to 128)

    Matmuls use the MXU in bf16 with f32 accumulation; bias add and ReLU in
    f32; the activation is re-cast to bf16 for the next layer.  Intermediates
    never leave VMEM / vregs.
    """
    x_ref = refs[0]
    o_ref = refs[-1]

    x = x_ref[...].astype(jnp.bfloat16)          # in-kernel cast (VPU), no wrapper pre-pass
    y = None
    for l in range(num_layers):
        w_ref = refs[1 + 2 * l]
        b_ref = refs[2 + 2 * l]
        y = jnp.dot(x, w_ref[...], preferred_element_type=jnp.float32)
        y = y + b_ref[...]                        # broadcast (1, n_out) over batch
        if l < num_layers - 1:
            y = jnp.maximum(y, 0.0)               # ReLU on hidden layers only
            x = y.astype(jnp.bfloat16)
    o_ref[...] = y.astype(o_ref.dtype)


# --------------------------------------------------------------------------- #
# VMEM budgeting / tile selection
# --------------------------------------------------------------------------- #
def _vmem_estimate_bytes(tile_b, f0, packed_params, fl_pad, weight_buffers):
    weights = sum(w.size * w.dtype.itemsize + b.size * b.dtype.itemsize
                  for w, b in packed_params)
    x_tile = 2 * tile_b * f0 * 4          # double-buffered f32 input tile
    o_tile = 2 * tile_b * fl_pad * 2      # double-buffered bf16 output tile
    widest = max(w.shape[1] for w, _ in packed_params)
    act = tile_b * widest * (4 + 2)       # in-flight f32 accumulator + bf16 activation
    return weight_buffers * weights + x_tile + o_tile + act


def _pick_tile_b(B, f0, packed_params, fl_pad, weight_buffers):
    if B <= BF16_SUBLANE:
        return B                           # single full-batch block (full-dim BlockSpec)
    cap = min(MAX_TILE_B, (B // BF16_SUBLANE) * BF16_SUBLANE)
    t = cap
    while t > BF16_SUBLANE and _vmem_estimate_bytes(
            t, f0, packed_params, fl_pad, weight_buffers) > VMEM_BUDGET:
        t -= BF16_SUBLANE
    # TODO(synk): if the packed weights alone exceed the per-TC VMEM budget
    # (large nets on v7x), fall back to streaming weights via pltpu.emit_pipeline
    # instead of keeping them VMEM-resident.
    return t


def _resident_spec(shape, single_buffer):
    """BlockSpec for a grid-invariant (VMEM-resident) weight/bias block.

    Constant index_map => the block is fetched once; pl.Buffered(1) requests a
    single buffer so it is not double-buffered.  Falls back to a plain spec if
    the running jax does not expose pipeline_mode/Buffered."""
    index_map = lambda i: (0, 0)
    if single_buffer and hasattr(pl, "Buffered"):
        try:
            return pl.BlockSpec(shape, index_map, pipeline_mode=pl.Buffered(1))
        except TypeError:
            pass
    return pl.BlockSpec(shape, index_map)


# --------------------------------------------------------------------------- #
# Wrapper
# --------------------------------------------------------------------------- #
def fused_mlp(x, packed_params, *, out_features, tile_b=None,
              single_buffer_weights=True):
    """Run the whole MLP as a single Pallas kernel, tiled over the batch."""
    B, f0 = x.shape
    num_layers = len(packed_params)
    assert packed_params[0][0].shape[0] == f0, "first weight must match input width"
    fl_pad = packed_params[-1][0].shape[1]
    weight_buffers = 1 if single_buffer_weights else 2

    if tile_b is None:
        tile_b = _pick_tile_b(B, f0, packed_params, fl_pad, weight_buffers)
    tile_b = min(tile_b, B)
    if tile_b != B and tile_b % BF16_SUBLANE != 0:
        raise ValueError("tile_b must equal the batch size or be a multiple of 16")
    grid = (pl.cdiv(B, tile_b),)

    # BlockSpecs: x / out tiled over the batch (partial trailing block handled
    # by Pallas: OOB reads are per-row garbage that only feeds dropped OOB
    # writes); weights & biases are VMEM-resident, single-buffered blocks.
    in_specs = [pl.BlockSpec((tile_b, f0), lambda i: (i, 0))]
    flat_inputs = [x]
    for (w, b) in packed_params:
        fin, fout = w.shape
        in_specs.append(_resident_spec((fin, fout), single_buffer_weights))
        in_specs.append(_resident_spec((1, fout), single_buffer_weights))
        flat_inputs += [w, b]
    out_spec = pl.BlockSpec((tile_b, fl_pad), lambda i: (i, 0))

    flops = 2 * B * sum(w.shape[0] * w.shape[1] for w, _ in packed_params)
    bytes_accessed = (
        x.size * x.dtype.itemsize
        + sum(w.size * w.dtype.itemsize + b.size * b.dtype.itemsize
              for w, b in packed_params)
        + B * fl_pad * 2)

    est = _vmem_estimate_bytes(tile_b, f0, packed_params, fl_pad, weight_buffers)
    vmem_limit = int(min(max(int(est * 1.5) + (4 << 20), 32 << 20), 56 << 20))

    out = pl.pallas_call(
        functools.partial(_fused_mlp_kernel, num_layers=num_layers),
        out_shape=jax.ShapeDtypeStruct((B, fl_pad), jnp.bfloat16),
        grid=grid,
        in_specs=in_specs,
        out_specs=out_spec,
        compiler_params=pltpu.CompilerParams(
            dimension_semantics=("parallel",),
            vmem_limit_bytes=vmem_limit),
        cost_estimate=pl.CostEstimate(
            flops=flops, transcendentals=0, bytes_accessed=bytes_accessed),
    )(*flat_inputs)

    # Slice the lane padding off the (already bf16) output.
    return out[:, :out_features]


net_forward = jax.jit(
    fused_mlp,
    static_argnames=("out_features", "tile_b", "single_buffer_weights"))


# --------------------------------------------------------------------------- #
# Parameter init / packing
# --------------------------------------------------------------------------- #
def init_params(key, layers):
    """Deterministic init mirroring Net.__init__:
       weight_i = randn(n_out, n_in) * sqrt(a / n_in), a = 1 for i == 0 else 2
       bias_i   = zeros(n_out)
    """
    assert len(layers) >= 2, "At least two layers are required"
    params = []
    for i in range(len(layers) - 1):
        n_in, n_out = layers[i], layers[i + 1]
        key, sub = jax.random.split(key)
        a = 1.0 if i == 0 else 2.0
        w = jax.random.normal(sub, (n_out, n_in), dtype=jnp.float32) * sqrt(a / n_in)
        b = jnp.zeros((n_out,), dtype=jnp.float32)
        params.append((w, b))
    return params


def pack_params(params):
    """One-time packing (outside jit): transpose W to (n_in, n_out), zero-pad
    output dims (and hidden input dims) to multiples of 128 lanes, cast weights
    to bf16, biases to (1, n_out_pad) f32.  The FIRST layer keeps its true n_in
    so the input x needs no feature padding at all."""
    packed = []
    for i, (w, b) in enumerate(params):
        n_out, n_in = w.shape
        n_in_pad = n_in if i == 0 else _round_up(n_in, LANE)
        n_out_pad = _round_up(n_out, LANE)
        w_t = jnp.zeros((n_in_pad, n_out_pad), jnp.float32)
        w_t = w_t.at[:n_in, :n_out].set(w.T)
        b_p = jnp.zeros((1, n_out_pad), jnp.float32)
        b_p = b_p.at[0, :n_out].set(b)
        packed.append((w_t.astype(jnp.bfloat16), b_p))
    return packed


# --------------------------------------------------------------------------- #
# Reference & test
# --------------------------------------------------------------------------- #
def net_forward_ref(x, params):
    """Pure-JAX reference mirroring the kernel's bf16-matmul / f32-accumulate path."""
    h = x.astype(jnp.bfloat16)
    y = None
    for i, (w, b) in enumerate(params):
        y = jnp.dot(h, w.T.astype(jnp.bfloat16),
                    preferred_element_type=jnp.float32) + b
        if i < len(params) - 1:
            h = jnp.maximum(y, 0.0).astype(jnp.bfloat16)
    return y


if __name__ == "__main__":
    # Small shapes consistent with the module: layers = [n_in, h1, h2, n_out]
    layers = [16, 32, 32, 8]
    batch = 4

    key = jax.random.PRNGKey(0)
    key, xkey = jax.random.split(key)
    x = jax.random.normal(xkey, (batch, layers[0]), dtype=jnp.float32)

    params = init_params(key, layers)
    packed = pack_params(params)  # transpose/pad/cast ONCE, outside jit

    try:
        out = net_forward(x, packed, out_features=layers[-1])
        out = jax.block_until_ready(out)
    except Exception:
        # Fallback for jax builds without BlockSpec pipeline_mode support.
        out = net_forward(x, packed, out_features=layers[-1],
                          single_buffer_weights=False)
        out = jax.block_until_ready(out)

    ref = net_forward_ref(x, params)
    assert out.shape == (batch, layers[-1])
    assert jnp.allclose(out.astype(jnp.float32), ref, atol=2e-2, rtol=2e-2), \
        "mismatch vs reference"

    print("KERNEL_OK")
</pallas_src>

<mosaic_0001>
module attributes {stable_mosaic.version = 11 : i64} {
  func.func @_fused_mlp_kernel(%arg0: i32, %arg1: memref<4x16xf32, #tpu.memory_space<vmem>>, %arg2: memref<16x128xbf16, #tpu.memory_space<vmem>>, %arg3: memref<1x128xf32, #tpu.memory_space<vmem>>, %arg4: memref<128x128xbf16, #tpu.memory_space<vmem>>, %arg5: memref<1x128xf32, #tpu.memory_space<vmem>>, %arg6: memref<128x128xbf16, #tpu.memory_space<vmem>>, %arg7: memref<1x128xf32, #tpu.memory_space<vmem>>, %arg8: memref<4x128xbf16, #tpu.memory_space<vmem>>) attributes {dimension_semantics = [#tpu.dimension_semantics<parallel>], iteration_bounds = array<i64: 1>, scalar_prefetch = 0 : i64, scratch_operands = 0 : i64, tpu.core_type = #tpu.core_type<tc>, window_params = [{transform_indices = @transform_0, window_bounds = array<i64: 4, 16>}, {pipeline_mode = #tpu.pipeline_mode<synchronous>, transform_indices = @transform_1, window_bounds = array<i64: 16, 128>}, {pipeline_mode = #tpu.pipeline_mode<synchronous>, transform_indices = @transform_2, window_bounds = array<i64: 1, 128>}, {pipeline_mode = #tpu.pipeline_mode<synchronous>, transform_indices = @transform_3, window_bounds = array<i64: 128, 128>}, {pipeline_mode = #tpu.pipeline_mode<synchronous>, transform_indices = @transform_4, window_bounds = array<i64: 1, 128>}, {pipeline_mode = #tpu.pipeline_mode<synchronous>, transform_indices = @transform_5, window_bounds = array<i64: 128, 128>}, {pipeline_mode = #tpu.pipeline_mode<synchronous>, transform_indices = @transform_6, window_bounds = array<i64: 1, 128>}, {transform_indices = @transform_7, window_bounds = array<i64: 4, 128>}]} {
    %c0 = arith.constant 0 : index
    %c0_0 = arith.constant 0 : index
    %0 = vector.load %arg1[%c0, %c0_0] : memref<4x16xf32, #tpu.memory_space<vmem>>, vector<4x16xf32>
    %1 = arith.truncf %0 : vector<4x16xf32> to vector<4x16xbf16>
    %c0_1 = arith.constant 0 : index
    %c0_2 = arith.constant 0 : index
    %2 = vector.load %arg2[%c0_1, %c0_2] : memref<16x128xbf16, #tpu.memory_space<vmem>>, vector<16x128xbf16>
    %cst = arith.constant dense<0.000000e+00> : vector<4x128xf32>
    %3 = tpu.matmul %1, %2, %cst {dimension_numbers = #tpu.dot_dimension_numbers<[1], [0], [0], [1], [0, 0, 1, 1], [], []>} : vector<4x16xbf16>, vector<16x128xbf16>, vector<4x128xf32> -> vector<4x128xf32>
    %c0_3 = arith.constant 0 : index
    %c0_4 = arith.constant 0 : index
    %4 = vector.load %arg3[%c0_3, %c0_4] : memref<1x128xf32, #tpu.memory_space<vmem>>, vector<1x128xf32>
    %5 = vector.broadcast %4 : vector<1x128xf32> to vector<4x128xf32>
    %6 = arith.addf %3, %5 : vector<4x128xf32>
    %cst_5 = arith.constant 0.000000e+00 : f32
    %7 = vector.broadcast %cst_5 : f32 to vector<4x128xf32>
    %8 = arith.maximumf %6, %7 : vector<4x128xf32>
    %9 = arith.truncf %8 : vector<4x128xf32> to vector<4x128xbf16>
    %c0_6 = arith.constant 0 : index
    %c0_7 = arith.constant 0 : index
    %10 = vector.load %arg4[%c0_6, %c0_7] : memref<128x128xbf16, #tpu.memory_space<vmem>>, vector<128x128xbf16>
    %cst_8 = arith.constant dense<0.000000e+00> : vector<4x128xf32>
    %11 = tpu.matmul %9, %10, %cst_8 {dimension_numbers = #tpu.dot_dimension_numbers<[1], [0], [0], [1], [0, 0, 1, 1], [], []>} : vector<4x128xbf16>, vector<128x128xbf16>, vector<4x128xf32> -> vector<4x128xf32>
    %c0_9 = arith.constant 0 : index
    %c0_10 = arith.constant 0 : index
    %12 = vector.load %arg5[%c0_9, %c0_10] : memref<1x128xf32, #tpu.memory_space<vmem>>, vector<1x128xf32>
    %13 = vector.broadcast %12 : vector<1x128xf32> to vector<4x128xf32>
    %14 = arith.addf %11, %13 : vector<4x128xf32>
    %cst_11 = arith.constant 0.000000e+00 : f32
    %15 = vector.broadcast %cst_11 : f32 to vector<4x128xf32>
    %16 = arith.maximumf %14, %15 : vector<4x128xf32>
    %17 = arith.truncf %16 : vector<4x128xf32> to vector<4x128xbf16>
    %c0_12 = arith.constant 0 : index
    %c0_13 = arith.constant 0 : index
    %18 = vector.load %arg6[%c0_12, %c0_13] : memref<128x128xbf16, #tpu.memory_space<vmem>>, vector<128x128xbf16>
    %cst_14 = arith.constant dense<0.000000e+00> : vector<4x128xf32>
    %19 = tpu.matmul %17, %18, %cst_14 {dimension_numbers = #tpu.dot_dimension_numbers<[1], [0], [0], [1], [0, 0, 1, 1], [], []>} : vector<4x128xbf16>, vector<128x128xbf16>, vector<4x128xf32> -> vector<4x128xf32>
    %c0_15 = arith.constant 0 : index
    %c0_16 = arith.constant 0 : index
    %20 = vector.load %arg7[%c0_15, %c0_16] : memref<1x128xf32, #tpu.memory_space<vmem>>, vector<1x128xf32>
    %21 = vector.broadcast %20 : vector<1x128xf32> to vector<4x128xf32>
    %22 = arith.addf %19, %21 : vector<4x128xf32>
    %23 = arith.truncf %22 : vector<4x128xf32> to vector<4x128xbf16>
    %c0_17 = arith.constant 0 : index
    %c0_18 = arith.constant 0 : index
    %24 = vector.load %arg8[%c0_17, %c0_18] : memref<4x128xbf16, #tpu.memory_space<vmem>>, vector<4x128xbf16>
    tpu.vector_store %arg8[%c0_17, %c0_18], %23 {strides = array<i32>} : memref<4x128xbf16, #tpu.memory_space<vmem>>, vector<4x128xbf16>,
    return
  }
  func.func @transform_0(%arg0: i32) -> (i32, i32) {
    %c0_i32 = arith.constant 0 : i32
    %c0_i32_0 = arith.constant 0 : i32
    return %arg0, %c0_i32 : i32, i32
  }
  func.func @transform_1(%arg0: i32) -> (i32, i32) {
    %c0_i32 = arith.constant 0 : i32
    %c0_i32_0 = arith.constant 0 : i32
    %c0_i32_1 = arith.constant 0 : i32
    return %c0_i32, %c0_i32_0 : i32, i32
  }
  func.func @transform_2(%arg0: i32) -> (i32, i32) {
    %c0_i32 = arith.constant 0 : i32
    %c0_i32_0 = arith.constant 0 : i32
    %c0_i32_1 = arith.constant 0 : i32
    return %c0_i32, %c0_i32_0 : i32, i32
  }
  func.func @transform_3(%arg0: i32) -> (i32, i32) {
    %c0_i32 = arith.constant 0 : i32
    %c0_i32_0 = arith.constant 0 : i32
    %c0_i32_1 = arith.constant 0 : i32
    return %c0_i32, %c0_i32_0 : i32, i32
  }
  func.func @transform_4(%arg0: i32) -> (i32, i32) {
    %c0_i32 = arith.constant 0 : i32
    %c0_i32_0 = arith.constant 0 : i32
    %c0_i32_1 = arith.constant 0 : i32
    return %c0_i32, %c0_i32_0 : i32, i32
  }
  func.func @transform_5(%arg0: i32) -> (i32, i32) {
    %c0_i32 = arith.constant 0 : i32
    %c0_i32_0 = arith.constant 0 : i32
    %c0_i32_1 = arith.constant 0 : i32
    return %c0_i32, %c0_i32_0 : i32, i32
  }
  func.func @transform_6(%arg0: i32) -> (i32, i32) {
    %c0_i32 = arith.constant 0 : i32
    %c0_i32_0 = arith.constant 0 : i32
    %c0_i32_1 = arith.constant 0 : i32
    return %c0_i32, %c0_i32_0 : i32, i32
  }
  func.func @transform_7(%arg0: i32) -> (i32, i32) {
    %c0_i32 = arith.constant 0 : i32
    %c0_i32_0 = arith.constant 0 : i32
    return %arg0, %c0_i32 : i32, i32
  }
}

module attributes {stable_mosaic.version = 11 : i64} {
  func.func @_fused_mlp_kernel(%arg0: i32, %arg1: memref<4x16xf32, #tpu.memory_space<vmem>>, %arg2: memref<16x128xbf16, #tpu.memory_space<vmem>>, %arg3: memref<1x128xf32, #tpu.memory_space<vmem>>, %arg4: memref<128x128xbf16, #tpu.memory_space<vmem>>, %arg5: memref<1x128xf32, #tpu.memory_space<vmem>>, %arg6: memref<128x128xbf16, #tpu.memory_space<vmem>>, %arg7: memref<1x128xf32, #tpu.memory_space<vmem>>, %arg8: memref<4x128xbf16, #tpu.memory_space<vmem>>) attributes {dimension_semantics = [#tpu.dimension_semantics<parallel>], iteration_bounds = array<i64: 1>, scalar_prefetch = 0 : i64, scratch_operands = 0 : i64, tpu.core_type = #tpu.core_type<tc>, window_params = [{transform_indices = @transform_0, window_bounds = array<i64: 4, 16>}, {pipeline_mode = #tpu.pipeline_mode<synchronous>, transform_indices = @transform_1, window_bounds = array<i64: 16, 128>}, {pipeline_mode = #tpu.pipeline_mode<synchronous>, transform_indices = @transform_2, window_bounds = array<i64: 1, 128>}, {pipeline_mode = #tpu.pipeline_mode<synchronous>, transform_indices = @transform_3, window_bounds = array<i64: 128, 128>}, {pipeline_mode = #tpu.pipeline_mode<synchronous>, transform_indices = @transform_4, window_bounds = array<i64: 1, 128>}, {pipeline_mode = #tpu.pipeline_mode<synchronous>, transform_indices = @transform_5, window_bounds = array<i64: 128, 128>}, {pipeline_mode = #tpu.pipeline_mode<synchronous>, transform_indices = @transform_6, window_bounds = array<i64: 1, 128>}, {transform_indices = @transform_7, window_bounds = array<i64: 4, 128>}]} {
    %c0 = arith.constant 0 : index
    %c0_0 = arith.constant 0 : index
    %0 = vector.load %arg1[%c0, %c0_0] : memref<4x16xf32, #tpu.memory_space<vmem>>, vector<4x16xf32>
    %1 = arith.truncf %0 : vector<4x16xf32> to vector<4x16xbf16>
    %c0_1 = arith.constant 0 : index
    %c0_2 = arith.constant 0 : index
    %2 = vector.load %arg2[%c0_1, %c0_2] : memref<16x128xbf16, #tpu.memory_space<vmem>>, vector<16x128xbf16>
    %cst = arith.constant dense<0.000000e+00> : vector<4x128xf32>
    %3 = tpu.matmul %1, %2, %cst {dimension_numbers = #tpu.dot_dimension_numbers<[1], [0], [0], [1], [0, 0, 1, 1], [], []>} : vector<4x16xbf16>, vector<16x128xbf16>, vector<4x128xf32> -> vector<4x128xf32>
    %c0_3 = arith.constant 0 : index
    %c0_4 = arith.constant 0 : index
    %4 = vector.load %arg3[%c0_3, %c0_4] : memref<1x128xf32, #tpu.memory_space<vmem>>, vector<1x128xf32>
    %5 = vector.broadcast %4 : vector<1x128xf32> to vector<4x128xf32>
    %6 = arith.addf %3, %5 : vector<4x128xf32>
    %cst_5 = arith.constant 0.000000e+00 : f32
    %7 = vector.broadcast %cst_5 : f32 to vector<4x128xf32>
    %8 = arith.maximumf %6, %7 : vector<4x128xf32>
    %9 = arith.truncf %8 : vector<4x128xf32> to vector<4x128xbf16>
    %c0_6 = arith.constant 0 : index
    %c0_7 = arith.constant 0 : index
    %10 = vector.load %arg4[%c0_6, %c0_7] : memref<128x128xbf16, #tpu.memory_space<vmem>>, vector<128x128xbf16>
    %cst_8 = arith.constant dense<0.000000e+00> : vector<4x128xf32>
    %11 = tpu.matmul %9, %10, %cst_8 {dimension_numbers = #tpu.dot_dimension_numbers<[1], [0], [0], [1], [0, 0, 1, 1], [], []>} : vector<4x128xbf16>, vector<128x128xbf16>, vector<4x128xf32> -> vector<4x128xf32>
    %c0_9 = arith.constant 0 : index
    %c0_10 = arith.constant 0 : index
    %12 = vector.load %arg5[%c0_9, %c0_10] : memref<1x128xf32, #tpu.memory_space<vmem>>, vector<1x128xf32>
    %13 = vector.broadcast %12 : vector<1x128xf32> to vector<4x128xf32>
    %14 = arith.addf %11, %13 : vector<4x128xf32>
    %cst_11 = arith.constant 0.000000e+00 : f32
    %15 = vector.broadcast %cst_11 : f32 to vector<4x128xf32>
    %16 = arith.maximumf %14, %15 : vector<4x128xf32>
    %17 = arith.truncf %16 : vector<4x128xf32> to vector<4x128xbf16>
    %c0_12 = arith.constant 0 : index
    %c0_13 = arith.constant 0 : index
    %18 = vector.load %arg6[%c0_12, %c0_13] : memref<128x128xbf16, #tpu.memory_space<vmem>>, vector<128x128xbf16>
    %cst_14 = arith.constant dense<0.000000e+00> : vector<4x128xf32>
    %19 = tpu.matmul %17, %18, %cst_14 {dimension_numbers = #tpu.dot_dimension_numbers<[1], [0], [0], [1], [0, 0, 1, 1], [], []>} : vector<4x128xbf16>, vector<128x128xbf16>, vector<4x128xf32> -> vector<4x128xf32>
    %c0_15 = arith.constant 0 : index
    %c0_16 = arith.constant 0 : index
    %20 = vector.load %arg7[%c0_15, %c0_16] : memref<1x128xf32, #tpu.memory_space<vmem>>, vector<1x128xf32>
    %21 = vector.broadcast %20 : vector<1x128xf32> to vector<4x128xf32>
    %22 = arith.addf %19, %21 : vector<4x128xf32>
    %23 = arith.truncf %22 : vector<4x128xf32> to vector<4x128xbf16>
    %c0_17 = arith.constant 0 : index
    %c0_18 = arith.constant 0 : index
    %24 = vector.load %arg8[%c0_17, %c0_18] : memref<4x128xbf16, #tpu.memory_space<vmem>>, vector<4x128xbf16>
    tpu.vector_store %arg8[%c0_17, %c0_18], %23 {strides = array<i32>} : memref<4x128xbf16, #tpu.memory_space<vmem>>, vector<4x128xbf16>,
    return
  }
  func.func @transform_0(%arg0: i32) -> (i32, i32) {
    %c0_i32 = arith.constant 0 : i32
    %c0_i32_0 = arith.constant 0 : i32
    return %arg0, %c0_i32 : i32, i32
  }
  func.func @transform_1(%arg0: i32) -> (i32, i32) {
    %c0_i32 = arith.constant 0 : i32
    %c0_i32_0 = arith.constant 0 : i32
    %c0_i32_1 = arith.constant 0 : i32
    return %c0_i32, %c0_i32_0 : i32, i32
  }
  func.func @transform_2(%arg0: i32) -> (i32, i32) {
    %c0_i32 = arith.constant 0 : i32
    %c0_i32_0 = arith.constant 0 : i32
    %c0_i32_1 = arith.constant 0 : i32
    return %c0_i32, %c0_i32_0 : i32, i32
  }
  func.func @transform_3(%arg0: i32) -> (i32, i32) {
    %c0_i32 = arith.constant 0 : i32
    %c0_i32_0 = arith.constant 0 : i32
    %c0_i32_1 = arith.constant 0 : i32
    return %c0_i32, %c0_i32_0 : i32, i32
  }
  func.func @transform_4(%arg0: i32) -> (i32, i32) {
    %c0_i32 = arith.constant 0 : i32
    %c0_i32_0 = arith.constant 0 : i32
    %c0_i32_1 = arith.constant 0 : i32
    return %c0_i32, %c0_i32_0 : i32, i32
  }
  func.func @transform_5(%arg0: i32) -> (i32, i32) {
    %c0_i32 = arith.constant 0 : i32
    %c0_i32_0 = arith.constant 0 : i32
    %c0_i32_1 = arith.constant 0 : i32
    return %c0_i32, %c0_i32_0 : i32, i32
  }
  func.func @transform_6(%arg0: i32) -> (i32, i32) {
    %c0_i32 = arith.constant 0 : i32
    %c0_i32_0 = arith.constant 0 : i32
    %c0_i32_1 = arith.constant 0 : i32
    return %c0_i32, %c0_i32_0 : i32, i32
  }
  func.func @transform_7(%arg0: i32) -> (i32, i32) {
    %c0_i32 = arith.constant 0 : i32
    %c0_i32_0 = arith.constant 0 : i32
    return %arg0, %c0_i32 : i32, i32
  }
}

</mosaic_0001>

<llo_original>
// kernel: fused_mlp.1
$region0: #{fused_mlp.1}
  #allocation0 [shape = 'u32[]', space=smem, size = 0x4, offset = 0x4, fixed_abs, tag = 'smem constant byte address 0x4 - core index']
  #allocation1 [shape = 'u32[72,128]{1,0:T(1,128)}', space=vmem, size = 0x9000, scoped, tag = 'internal scratch']
  %s0 = inlined_call_operand.hbm [shape: f32[4,16], index: 0, kind: input, shape index: {}]
  %s1 = inlined_call_operand.hbm [shape: bf16[16,128], index: 1, kind: input, shape index: {}]
  %s2 = inlined_call_operand.vmem [shape: f32[1,128], index: 2, kind: input, shape index: {}]
  %s3 = inlined_call_operand.hbm [shape: bf16[128,128], index: 3, kind: input, shape index: {}]
  %s4 = inlined_call_operand.vmem [shape: f32[1,128], index: 4, kind: input, shape index: {}]
  %s5 = inlined_call_operand.hbm [shape: bf16[128,128], index: 5, kind: input, shape index: {}]
  %s6 = inlined_call_operand.vmem [shape: f32[1,128], index: 6, kind: input, shape index: {}]
  %s7 = inlined_call_operand.hbm [shape: bf16[4,128], index: 7, kind: output, shape index: {}]
  %s8 = sld [smem:[#allocation0]]
  $region54: #{fused_mlp.1} parent=0
    _
  %s10 = ssub.s32 1, %s8
  %s11 = scalar_select 0, %s10, %s8
  $region1: #{fused_mlp.1} parent=0
    #allocation2 [shape = 'u8[2048]{0}', space=vmem, size = 0x800, scoped, tag = 'input window, operand 0, single buffered']
    #allocation3 [shape = 's32[1]{0}', space=sflag, size = 0x4, scoped, tag = 'scoped memory for fused_mlp.1']
    #allocation4 [shape = 's32[1]{0}', space=sflag, size = 0x4, scoped, tag = 'scoped memory for fused_mlp.1']
    #allocation5 [shape = 'u8[4096]{0}', space=vmem, size = 0x1000, scoped, tag = 'input window, operand 1, single buffered']
    #allocation6 [shape = 's32[1]{0}', space=sflag, size = 0x4, scoped, tag = 'scoped memory for fused_mlp.1']
    #allocation7 [shape = 'u8[32768]{0}', space=vmem, size = 0x8000, scoped, tag = 'input window, operand 3, single buffered']
    #allocation8 [shape = 'u8[32768]{0}', space=vmem, size = 0x8000, scoped, tag = 'input window, operand 5, single buffered']
    #allocation9 [shape = 's32[1]{0}', space=sflag, size = 0x4, scoped, tag = 'scoped memory for fused_mlp.1']
    #allocation10 [shape = 'u8[1024]{0}', space=vmem, size = 0x400, scoped, tag = 'output window, operand 0, single buffered']
    %12 = vsyncpa [#allocation3], 0
    %13 = vsyncpa [#allocation6], 0
    %14 = vsyncpa [#allocation9], 0
    %15 = vsyncpa [#allocation4], 0
    // Predicated region
    $region2: #{fused_mlp.1} parent=1 // pred_check
      _
    $region3: #{fused_mlp.1} parent=1 // pred_check_branch
      %17 = sbr.rel (0) target = $region5
    $region4: #{fused_mlp.1} parent=1 // pred_region
      %19 = vsyncadd [#allocation3], 0
      %s21 = sshll.u32 %s0, 4
      %s22 = int_to_ptr.hbm [resolvable:$true] %s21
      %s23 = sshll.u32 [#allocation2], 4
      %s24 = int_to_ptr.vmem [resolvable:$true] %s23
      %26 = dma.hbm_to_vmem [thread:$0]  %s22, 64, %s24, [#allocation3]
    $region5: #{fused_mlp.1} parent=1 // pred_fallthru
      _
    // Predicated region
    $region6: #{fused_mlp.1} parent=1 // pred_check
      _
    $region7: #{fused_mlp.1} parent=1 // pred_check_branch
      %28 = sbr.rel (0) target = $region9
    $region8: #{fused_mlp.1} parent=1 // pred_region
      %30 = vsyncadd [#allocation6], 0
      %s31 = sshll.u32 %s1, 4
      %s32 = int_to_ptr.hbm [resolvable:$true] %s31
      %s33 = sshll.u32 [#allocation5], 4
      %s34 = int_to_ptr.vmem [resolvable:$true] %s33
      %39 = dma.hbm_to_vmem [thread:$0]  %s32, 128, %s34, [#allocation6], 64, 64, 4
    $region9: #{fused_mlp.1} parent=1 // pred_fallthru
      _
    // Predicated region
    $region10: #{fused_mlp.1} parent=1 // pred_check
      _
    $region11: #{fused_mlp.1} parent=1 // pred_check_branch
      %41 = sbr.rel (0) target = $region13
    $region12: #{fused_mlp.1} parent=1 // pred_region
      _
    $region13: #{fused_mlp.1} parent=1 // pred_fallthru
      _
    // Predicated region
    $region14: #{fused_mlp.1} parent=1 // pred_check
      _
    $region15: #{fused_mlp.1} parent=1 // pred_check_branch
      %43 = sbr.rel (0) target = $region17
    $region16: #{fused_mlp.1} parent=1 // pred_region
      %45 = vsyncadd [#allocation6], 0
      %s46 = sshll.u32 %s3, 4
      %s47 = int_to_ptr.hbm [resolvable:$true] %s46
      %s48 = sshll.u32 [#allocation7], 4
      %s49 = int_to_ptr.vmem [resolvable:$true] %s48
      %54 = dma.hbm_to_vmem [thread:$0]  %s47, 1024, %s49, [#allocation6], 64, 64, 4
    $region17: #{fused_mlp.1} parent=1 // pred_fallthru
      _
    // Predicated region
    $region18: #{fused_mlp.1} parent=1 // pred_check
      _
    $region19: #{fused_mlp.1} parent=1 // pred_check_branch
      %56 = sbr.rel (0) target = $region21
    $region20: #{fused_mlp.1} parent=1 // pred_region
      _
    $region21: #{fused_mlp.1} parent=1 // pred_fallthru
      _
    // Predicated region
    $region22: #{fused_mlp.1} parent=1 // pred_check
      _
    $region23: #{fused_mlp.1} parent=1 // pred_check_branch
      %58 = sbr.rel (0) target = $region25
    $region24: #{fused_mlp.1} parent=1 // pred_region
      %60 = vsyncadd [#allocation9], 0
      %s61 = sshll.u32 %s5, 4
      %s62 = int_to_ptr.hbm [resolvable:$true] %s61
      %s63 = sshll.u32 [#allocation8], 4
      %s64 = int_to_ptr.vmem [resolvable:$true] %s63
      %69 = dma.hbm_to_vmem [thread:$0]  %s62, 1024, %s64, [#allocation9], 64, 64, 4
    $region25: #{fused_mlp.1} parent=1 // pred_fallthru
      _
    // Predicated region
    $region26: #{fused_mlp.1} parent=1 // pred_check
      _
    $region27: #{fused_mlp.1} parent=1 // pred_check_branch
      %71 = sbr.rel (0) target = $region29
    $region28: #{fused_mlp.1} parent=1 // pred_region
      _
    $region29: #{fused_mlp.1} parent=1 // pred_fallthru
      _
    // Predicated region
    $region30: #{fused_mlp.1} parent=1 // pred_check
      _
    $region31: #{fused_mlp.1} parent=1 // pred_check_branch
      %73 = sbr.rel (0) target = $region33
    $region32: #{fused_mlp.1} parent=1 // pred_region
      %75 = dma.done [#allocation3], 64
    $region33: #{fused_mlp.1} parent=1 // pred_fallthru
      _
    // Predicated region
    $region34: #{fused_mlp.1} parent=1 // pred_check
      _
    $region35: #{fused_mlp.1} parent=1 // pred_check_branch
      %77 = sbr.rel (0) target = $region37
    $region36: #{fused_mlp.1} parent=1 // pred_region
      %79 = dma.done [#allocation6], 128
    $region37: #{fused_mlp.1} parent=1 // pred_fallthru
      _
    // Predicated region
    $region38: #{fused_mlp.1} parent=1 // pred_check
      _
    $region39: #{fused_mlp.1} parent=1 // pred_check_branch
      %81 = sbr.rel (0) target = $region41
    $region40: #{fused_mlp.1} parent=1 // pred_region
      %83 = dma.done [#allocation6], 1024
    $region41: #{fused_mlp.1} parent=1 // pred_fallthru
      _
    // Predicated region
    $region42: #{fused_mlp.1} parent=1 // pred_check
      _
    $region43: #{fused_mlp.1} parent=1 // pred_check_branch
      %85 = sbr.rel (0) target = $region45
    $region44: #{fused_mlp.1} parent=1 // pred_region
      %87 = dma.done [#allocation9], 1024
    $region45: #{fused_mlp.1} parent=1 // pred_fallthru
      _
    %v89 = vld [vmem:[#allocation2] sm:$0xf]
    %v90 = vpack.c.bf16 %v89, %v89
    %v91 = vld [vmem:[#allocation5] sm:$0xf]
    %v92 = vld [vmem:[#allocation5 + $0x4] sm:$0xf]
    %v93 = vld [vmem:[%s2] sm:$0x1]
    %v95 = vperm.slane %v93, 0
    %v99 = vunpack.c.l.b16 %v91
    %v100 = vunpack.c.l.b16 %v92
    %v101 = vpack.c.b16 %v100, %v99
    %vm103 = vcmask 130048
    %v105 = vsel %vm103, %v90, 0
    %107 = vmatpush.bf16.msra.mxu0 0
    %108 = vmatpush.bf16.msra.mxu0 0
    %109 = vmatpush.bf16.msra.mxu0 0
    %110 = vmatpush.bf16.msra.mxu0 0
    %111 = vmatpush.bf16.msra.mxu0 0
    %112 = vmatpush.bf16.msra.mxu0 0
    %113 = vmatpush.bf16.msra.mxu0 0
    %114 = vmatpush.bf16.msra.mxu0 %v101
    %115 = vmatmul.bf16.gmra.mxu0 %v105
    %v116 = vpop.f32.mrf.mxu0
    %v117 = vadd.f32 %v95, %v116
    %v118 = vpop.f32.mrf.mxu0
    %119 = vdwg.mxu0
    %v120 = vmax.f32 %v117, 0.0
    %v121 = vpack.c.bf16 %v120, %v120
    %v122 = vld [vmem:[#allocation7] sm:$0xf]
    %v123 = vld [vmem:[#allocation7 + $0x4] sm:$0xf]
    %v124 = vld [vmem:[#allocation7 + $0x8] sm:$0xf]
    %v125 = vld [vmem:[#allocation7 + $0xc] sm:$0xf]
    %v126 = vld [vmem:[#allocation7 + $0x10] sm:$0xf]
    %v127 = vld [vmem:[#allocation7 + $0x14] sm:$0xf]
    %v128 = vld [vmem:[#allocation7 + $0x18] sm:$0xf]
    %v129 = vld [vmem:[#allocation7 + $0x1c] sm:$0xf]
    %v130 = vld [vmem:[#allocation7 + $0x20] sm:$0xf]
    %v131 = vld [vmem:[#allocation7 + $0x24] sm:$0xf]
    %v132 = vld [vmem:[#allocation7 + $0x28] sm:$0xf]
    %v133 = vld [vmem:[#allocation7 + $0x2c] sm:$0xf]
    %v134 = vld [vmem:[#allocation7 + $0x30] sm:$0xf]
    %v135 = vld [vmem:[#allocation7 + $0x34] sm:$0xf]
    %v136 = vld [vmem:[#allocation7 + $0x38] sm:$0xf]
    %v137 = vld [vmem:[#allocation7 + $0x3c] sm:$0xf]
    %v138 = vld [vmem:[%s4] sm:$0x1]
    %v140 = vperm.slane %v138, 0
    %v158 = vunpack.c.l.b16 %v122
    %v159 = vunpack.c.l.b16 %v123
    %v160 = vunpack.c.l.b16 %v124
    %v161 = vunpack.c.l.b16 %v125
    %v162 = vunpack.c.l.b16 %v126
    %v163 = vunpack.c.l.b16 %v127
    %v164 = vunpack.c.l.b16 %v128
    %v165 = vunpack.c.l.b16 %v129
    %v166 = vunpack.c.l.b16 %v130
    %v167 = vunpack.c.l.b16 %v131
    %v168 = vunpack.c.l.b16 %v132
    %v169 = vunpack.c.l.b16 %v133
    %v170 = vunpack.c.l.b16 %v134
    %v171 = vunpack.c.l.b16 %v135
    %v172 = vunpack.c.l.b16 %v136
    %v173 = vunpack.c.l.b16 %v137
    %v174 = vpack.c.b16 %v159, %v158
    %v175 = vpack.c.b16 %v161, %v160
    %v176 = vpack.c.b16 %v163, %v162
    %v177 = vpack.c.b16 %v165, %v164
    %v178 = vpack.c.b16 %v167, %v166
    %v179 = vpack.c.b16 %v169, %v168
    %v180 = vpack.c.b16 %v171, %v170
    %v181 = vpack.c.b16 %v173, %v172
    %190 = vmatpush.bf16.msra.mxu0 %v181
    %191 = vmatpush.bf16.msra.mxu0 %v180
    %192 = vmatpush.bf16.msra.mxu0 %v179
    %193 = vmatpush.bf16.msra.mxu0 %v178
    %194 = vmatpush.bf16.msra.mxu0 %v177
    %195 = vmatpush.bf16.msra.mxu0 %v176
    %196 = vmatpush.bf16.msra.mxu0 %v175
    %197 = vmatpush.bf16.msra.mxu0 %v174
    %198 = vmatmul.bf16.gmra.mxu0 %v121
    %v199 = vpop.f32.mrf.mxu0
    %v200 = vadd.f32 %v140, %v199
    %v201 = vpop.f32.mrf.mxu0
    %202 = vdwg.mxu0
    %v203 = vmax.f32 %v200, 0.0
    %v204 = vpack.c.bf16 %v203, %v203
    %v205 = vld [vmem:[#allocation8] sm:$0xf]
    %v206 = vld [vmem:[#allocation8 + $0x4] sm:$0xf]
    %v207 = vld [vmem:[#allocation8 + $0x8] sm:$0xf]
    %v208 = vld [vmem:[#allocation8 + $0xc] sm:$0xf]
    %v209 = vld [vmem:[#allocation8 + $0x10] sm:$0xf]
    %v210 = vld [vmem:[#allocation8 + $0x14] sm:$0xf]
    %v211 = vld [vmem:[#allocation8 + $0x18] sm:$0xf]
    %v212 = vld [vmem:[#allocation8 + $0x1c] sm:$0xf]
    %v213 = vld [vmem:[#allocation8 + $0x20] sm:$0xf]
    %v214 = vld [vmem:[#allocation8 + $0x24] sm:$0xf]
    %v215 = vld [vmem:[#allocation8 + $0x28] sm:$0xf]
    %v216 = vld [vmem:[#allocation8 + $0x2c] sm:$0xf]
    %v217 = vld [vmem:[#allocation8 + $0x30] sm:$0xf]
    %v218 = vld [vmem:[#allocation8 + $0x34] sm:$0xf]
    %v219 = vld [vmem:[#allocation8 + $0x38] sm:$0xf]
    %v220 = vld [vmem:[#allocation8 + $0x3c] sm:$0xf]
    %v221 = vld [vmem:[%s6] sm:$0x1]
    %v223 = vperm.slane %v221, 0
    %v241 = vunpack.c.l.b16 %v205
    %v242 = vunpack.c.l.b16 %v206
    %v243 = vunpack.c.l.b16 %v207
    %v244 = vunpack.c.l.b16 %v208
    %v245 = vunpack.c.l.b16 %v209
    %v246 = vunpack.c.l.b16 %v210
    %v247 = vunpack.c.l.b16 %v211
    %v248 = vunpack.c.l.b16 %v212
    %v249 = vunpack.c.l.b16 %v213
    %v250 = vunpack.c.l.b16 %v214
    %v251 = vunpack.c.l.b16 %v215
    %v252 = vunpack.c.l.b16 %v216
    %v253 = vunpack.c.l.b16 %v217
    %v254 = vunpack.c.l.b16 %v218
    %v255 = vunpack.c.l.b16 %v219
    %v256 = vunpack.c.l.b16 %v220
    %v257 = vpack.c.b16 %v242, %v241
    %v258 = vpack.c.b16 %v244, %v243
    %v259 = vpack.c.b16 %v246, %v245
    %v260 = vpack.c.b16 %v248, %v247
    %v261 = vpack.c.b16 %v250, %v249
    %v262 = vpack.c.b16 %v252, %v251
    %v263 = vpack.c.b16 %v254, %v253
    %v264 = vpack.c.b16 %v256, %v255
    %273 = vmatpush.bf16.msra.mxu0 %v264
    %274 = vmatpush.bf16.msra.mxu0 %v263
    %275 = vmatpush.bf16.msra.mxu0 %v262
    %276 = vmatpush.bf16.msra.mxu0 %v261
    %277 = vmatpush.bf16.msra.mxu0 %v260
    %278 = vmatpush.bf16.msra.mxu0 %v259
    %279 = vmatpush.bf16.msra.mxu0 %v258
    %280 = vmatpush.bf16.msra.mxu0 %v257
    %281 = vmatmul.bf16.gmra.mxu0 %v204
    %v282 = vpop.f32.mrf.mxu0
    %v283 = vadd.f32 %v223, %v282
    %v284 = vpop.f32.mrf.mxu0
    %285 = vdwg.mxu0
    %v286 = vpack.c.bf16 %v283, %v283
    %287 = vst [vmem:[#allocation10] sm:$0x3] %v286
    // Predicated region
    $region46: #{fused_mlp.1} parent=1 // pred_check
      _
    $region47: #{fused_mlp.1} parent=1 // pred_check_branch
      %289 = sbr.rel (0) target = $region49
    $region48: #{fused_mlp.1} parent=1 // pred_region
      %291 = vsyncadd [#allocation4], 0
      %s293 = sshll.u32 [#allocation10], 4
      %s294 = int_to_ptr.vmem [resolvable:$true] %s293
      %s295 = sshll.u32 %s7, 4
      %s296 = int_to_ptr.hbm [resolvable:$true] %s295
      %298 = dma.vmem_to_hbm [thread:$0]  %s294, 32, %s296, [#allocation4]
    $region49: #{fused_mlp.1} parent=1 // pred_fallthru
      _
    // Predicated region
    $region50: #{fused_mlp.1} parent=1 // pred_check
      _
    $region51: #{fused_mlp.1} parent=1 // pred_check_branch
      %300 = sbr.rel (0) target = $region53
    $region52: #{fused_mlp.1} parent=1 // pred_region
      %302 = dma.done [#allocation4], 32
    $region53: #{fused_mlp.1} parent=1 // pred_fallthru
      _
    %303 = vsyncpa [#allocation3], 1
    %304 = vsyncpa [#allocation6], 1
    %305 = vsyncpa [#allocation9], 1
    %306 = vsyncpa [#allocation4], 1

// kernel: fused_mlp.1
$region0: #{fused_mlp.1}
  #allocation0 [shape = 'u32[]', space=smem, size = 0x4, offset = 0x4, fixed_abs, tag = 'smem constant byte address 0x4 - core index']
  #allocation1 [shape = 'u32[72,128]{1,0:T(1,128)}', space=vmem, size = 0x9000, scoped, tag = 'internal scratch']
  %s0 = inlined_call_operand.hbm [shape: f32[4,16], index: 0, kind: input, shape index: {}]
  %s1 = inlined_call_operand.hbm [shape: bf16[16,128], index: 1, kind: input, shape index: {}]
  %s2 = inlined_call_operand.vmem [shape: f32[1,128], index: 2, kind: input, shape index: {}]
  %s3 = inlined_call_operand.hbm [shape: bf16[128,128], index: 3, kind: input, shape index: {}]
  %s4 = inlined_call_operand.vmem [shape: f32[1,128], index: 4, kind: input, shape index: {}]
  %s5 = inlined_call_operand.hbm [shape: bf16[128,128], index: 5, kind: input, shape index: {}]
  %s6 = inlined_call_operand.vmem [shape: f32[1,128], index: 6, kind: input, shape index: {}]
  %s7 = inlined_call_operand.hbm [shape: bf16[4,128], index: 7, kind: output, shape index: {}]
  %s8 = sld [smem:[#allocation0]]
  $region54: #{fused_mlp.1} parent=0
    _
  %s10 = ssub.s32 1, %s8
  %s11 = scalar_select 0, %s10, %s8
  $region1: #{fused_mlp.1} parent=0
    #allocation2 [shape = 'u8[2048]{0}', space=vmem, size = 0x800, scoped, tag = 'input window, operand 0, single buffered']
    #allocation3 [shape = 's32[1]{0}', space=sflag, size = 0x4, scoped, tag = 'scoped memory for fused_mlp.1']
    #allocation4 [shape = 's32[1]{0}', space=sflag, size = 0x4, scoped, tag = 'scoped memory for fused_mlp.1']
    #allocation5 [shape = 'u8[4096]{0}', space=vmem, size = 0x1000, scoped, tag = 'input window, operand 1, single buffered']
    #allocation6 [shape = 's32[1]{0}', space=sflag, size = 0x4, scoped, tag = 'scoped memory for fused_mlp.1']
    #allocation7 [shape = 'u8[32768]{0}', space=vmem, size = 0x8000, scoped, tag = 'input window, operand 3, single buffered']
    #allocation8 [shape = 'u8[32768]{0}', space=vmem, size = 0x8000, scoped, tag = 'input window, operand 5, single buffered']
    #allocation9 [shape = 's32[1]{0}', space=sflag, size = 0x4, scoped, tag = 'scoped memory for fused_mlp.1']
    #allocation10 [shape = 'u8[1024]{0}', space=vmem, size = 0x400, scoped, tag = 'output window, operand 0, single buffered']
    %12 = vsyncpa [#allocation3], 0
    %13 = vsyncpa [#allocation6], 0
    %14 = vsyncpa [#allocation9], 0
    %15 = vsyncpa [#allocation4], 0
    // Predicated region
    $region2: #{fused_mlp.1} parent=1 // pred_check
      _
    $region3: #{fused_mlp.1} parent=1 // pred_check_branch
      %17 = sbr.rel (0) target = $region5
    $region4: #{fused_mlp.1} parent=1 // pred_region
      %19 = vsyncadd [#allocation3], 0
      %s21 = sshll.u32 %s0, 4
      %s22 = int_to_ptr.hbm [resolvable:$true] %s21
      %s23 = sshll.u32 [#allocation2], 4
      %s24 = int_to_ptr.vmem [resolvable:$true] %s23
      %26 = dma.hbm_to_vmem [thread:$0]  %s22, 64, %s24, [#allocation3]
    $region5: #{fused_mlp.1} parent=1 // pred_fallthru
      _
    // Predicated region
    $region6: #{fused_mlp.1} parent=1 // pred_check
      _
    $region7: #{fused_mlp.1} parent=1 // pred_check_branch
      %28 = sbr.rel (0) target = $region9
    $region8: #{fused_mlp.1} parent=1 // pred_region
      %30 = vsyncadd [#allocation6], 0
      %s31 = sshll.u32 %s1, 4
      %s32 = int_to_ptr.hbm [resolvable:$true] %s31
      %s33 = sshll.u32 [#allocation5], 4
      %s34 = int_to_ptr.vmem [resolvable:$true] %s33
      %39 = dma.hbm_to_vmem [thread:$0]  %s32, 128, %s34, [#allocation6], 64, 64, 4
    $region9: #{fused_mlp.1} parent=1 // pred_fallthru
      _
    // Predicated region
    $region10: #{fused_mlp.1} parent=1 // pred_check
      _
    $region11: #{fused_mlp.1} parent=1 // pred_check_branch
      %41 = sbr.rel (0) target = $region13
    $region12: #{fused_mlp.1} parent=1 // pred_region
      _
    $region13: #{fused_mlp.1} parent=1 // pred_fallthru
      _
    // Predicated region
    $region14: #{fused_mlp.1} parent=1 // pred_check
      _
    $region15: #{fused_mlp.1} parent=1 // pred_check_branch
      %43 = sbr.rel (0) target = $region17
    $region16: #{fused_mlp.1} parent=1 // pred_region
      %45 = vsyncadd [#allocation6], 0
      %s46 = sshll.u32 %s3, 4
      %s47 = int_to_ptr.hbm [resolvable:$true] %s46
      %s48 = sshll.u32 [#allocation7], 4
      %s49 = int_to_ptr.vmem [resolvable:$true] %s48
      %54 = dma.hbm_to_vmem [thread:$0]  %s47, 1024, %s49, [#allocation6], 64, 64, 4
    $region17: #{fused_mlp.1} parent=1 // pred_fallthru
      _
    // Predicated region
    $region18: #{fused_mlp.1} parent=1 // pred_check
      _
    $region19: #{fused_mlp.1} parent=1 // pred_check_branch
      %56 = sbr.rel (0) target = $region21
    $region20: #{fused_mlp.1} parent=1 // pred_region
      _
    $region21: #{fused_mlp.1} parent=1 // pred_fallthru
      _
    // Predicated region
    $region22: #{fused_mlp.1} parent=1 // pred_check
      _
    $region23: #{fused_mlp.1} parent=1 // pred_check_branch
      %58 = sbr.rel (0) target = $region25
    $region24: #{fused_mlp.1} parent=1 // pred_region
      %60 = vsyncadd [#allocation9], 0
      %s61 = sshll.u32 %s5, 4
      %s62 = int_to_ptr.hbm [resolvable:$true] %s61
      %s63 = sshll.u32 [#allocation8], 4
      %s64 = int_to_ptr.vmem [resolvable:$true] %s63
      %69 = dma.hbm_to_vmem [thread:$0]  %s62, 1024, %s64, [#allocation9], 64, 64, 4
    $region25: #{fused_mlp.1} parent=1 // pred_fallthru
      _
    // Predicated region
    $region26: #{fused_mlp.1} parent=1 // pred_check
      _
    $region27: #{fused_mlp.1} parent=1 // pred_check_branch
      %71 = sbr.rel (0) target = $region29
    $region28: #{fused_mlp.1} parent=1 // pred_region
      _
    $region29: #{fused_mlp.1} parent=1 // pred_fallthru
      _
    // Predicated region
    $region30: #{fused_mlp.1} parent=1 // pred_check
      _
    $region31: #{fused_mlp.1} parent=1 // pred_check_branch
      %73 = sbr.rel (0) target = $region33
    $region32: #{fused_mlp.1} parent=1 // pred_region
      %75 = dma.done [#allocation3], 64
    $region33: #{fused_mlp.1} parent=1 // pred_fallthru
      _
    // Predicated region
    $region34: #{fused_mlp.1} parent=1 // pred_check
      _
    $region35: #{fused_mlp.1} parent=1 // pred_check_branch
      %77 = sbr.rel (0) target = $region37
    $region36: #{fused_mlp.1} parent=1 // pred_region
      %79 = dma.done [#allocation6], 128
    $region37: #{fused_mlp.1} parent=1 // pred_fallthru
      _
    // Predicated region
    $region38: #{fused_mlp.1} parent=1 // pred_check
      _
    $region39: #{fused_mlp.1} parent=1 // pred_check_branch
      %81 = sbr.rel (0) target = $region41
    $region40: #{fused_mlp.1} parent=1 // pred_region
      %83 = dma.done [#allocation6], 1024
    $region41: #{fused_mlp.1} parent=1 // pred_fallthru
      _
    // Predicated region
    $region42: #{fused_mlp.1} parent=1 // pred_check
      _
    $region43: #{fused_mlp.1} parent=1 // pred_check_branch
      %85 = sbr.rel (0) target = $region45
    $region44: #{fused_mlp.1} parent=1 // pred_region
      %87 = dma.done [#allocation9], 1024
    $region45: #{fused_mlp.1} parent=1 // pred_fallthru
      _
    %v89 = vld [vmem:[#allocation2] sm:$0xf]
    %v90 = vpack.c.bf16 %v89, %v89
    %v91 = vld [vmem:[#allocation5] sm:$0xf]
    %v92 = vld [vmem:[#allocation5 + $0x4] sm:$0xf]
    %v93 = vld [vmem:[%s2] sm:$0x1]
    %v95 = vperm.slane %v93, 0
    %v99 = vunpack.c.l.b16 %v91
    %v100 = vunpack.c.l.b16 %v92
    %v101 = vpack.c.b16 %v100, %v99
    %vm103 = vcmask 130048
    %v105 = vsel %vm103, %v90, 0
    %107 = vmatpush.bf16.msra.mxu0 0
    %108 = vmatpush.bf16.msra.mxu0 0
    %109 = vmatpush.bf16.msra.mxu0 0
    %110 = vmatpush.bf16.msra.mxu0 0
    %111 = vmatpush.bf16.msra.mxu0 0
    %112 = vmatpush.bf16.msra.mxu0 0
    %113 = vmatpush.bf16.msra.mxu0 0
    %114 = vmatpush.bf16.msra.mxu0 %v101
    %115 = vmatmul.bf16.gmra.mxu0 %v105
    %v116 = vpop.f32.mrf.mxu0
    %v117 = vadd.f32 %v95, %v116
    %v118 = vpop.f32.mrf.mxu0
    %119 = vdwg.mxu0
    %v120 = vmax.f32 %v117, 0.0
    %v121 = vpack.c.bf16 %v120, %v120
    %v122 = vld [vmem:[#allocation7] sm:$0xf]
    %v123 = vld [vmem:[#allocation7 + $0x4] sm:$0xf]
    %v124 = vld [vmem:[#allocation7 + $0x8] sm:$0xf]
    %v125 = vld [vmem:[#allocation7 + $0xc] sm:$0xf]
    %v126 = vld [vmem:[#allocation7 + $0x10] sm:$0xf]
    %v127 = vld [vmem:[#allocation7 + $0x14] sm:$0xf]
    %v128 = vld [vmem:[#allocation7 + $0x18] sm:$0xf]
    %v129 = vld [vmem:[#allocation7 + $0x1c] sm:$0xf]
    %v130 = vld [vmem:[#allocation7 + $0x20] sm:$0xf]
    %v131 = vld [vmem:[#allocation7 + $0x24] sm:$0xf]
    %v132 = vld [vmem:[#allocation7 + $0x28] sm:$0xf]
    %v133 = vld [vmem:[#allocation7 + $0x2c] sm:$0xf]
    %v134 = vld [vmem:[#allocation7 + $0x30] sm:$0xf]
    %v135 = vld [vmem:[#allocation7 + $0x34] sm:$0xf]
    %v136 = vld [vmem:[#allocation7 + $0x38] sm:$0xf]
    %v137 = vld [vmem:[#allocation7 + $0x3c] sm:$0xf]
    %v138 = vld [vmem:[%s4] sm:$0x1]
    %v140 = vperm.slane %v138, 0
    %v158 = vunpack.c.l.b16 %v122
    %v159 = vunpack.c.l.b16 %v123
    %v160 = vunpack.c.l.b16 %v124
    %v161 = vunpack.c.l.b16 %v125
    %v162 = vunpack.c.l.b16 %v126
    %v163 = vunpack.c.l.b16 %v127
    %v164 = vunpack.c.l.b16 %v128
    %v165 = vunpack.c.l.b16 %v129
    %v166 = vunpack.c.l.b16 %v130
    %v167 = vunpack.c.l.b16 %v131
    %v168 = vunpack.c.l.b16 %v132
    %v169 = vunpack.c.l.b16 %v133
    %v170 = vunpack.c.l.b16 %v134
    %v171 = vunpack.c.l.b16 %v135
    %v172 = vunpack.c.l.b16 %v136
    %v173 = vunpack.c.l.b16 %v137
    %v174 = vpack.c.b16 %v159, %v158
    %v175 = vpack.c.b16 %v161, %v160
    %v176 = vpack.c.b16 %v163, %v162
    %v177 = vpack.c.b16 %v165, %v164
    %v178 = vpack.c.b16 %v167, %v166
    %v179 = vpack.c.b16 %v169, %v168
    %v180 = vpack.c.b16 %v171, %v170
    %v181 = vpack.c.b16 %v173, %v172
    %190 = vmatpush.bf16.msra.mxu0 %v181
    %191 = vmatpush.bf16.msra.mxu0 %v180
    %192 = vmatpush.bf16.msra.mxu0 %v179
    %193 = vmatpush.bf16.msra.mxu0 %v178
    %194 = vmatpush.bf16.msra.mxu0 %v177
    %195 = vmatpush.bf16.msra.mxu0 %v176
    %196 = vmatpush.bf16.msra.mxu0 %v175
    %197 = vmatpush.bf16.msra.mxu0 %v174
    %198 = vmatmul.bf16.gmra.mxu0 %v121
    %v199 = vpop.f32.mrf.mxu0
    %v200 = vadd.f32 %v140, %v199
    %v201 = vpop.f32.mrf.mxu0
    %202 = vdwg.mxu0
    %v203 = vmax.f32 %v200, 0.0
    %v204 = vpack.c.bf16 %v203, %v203
    %v205 = vld [vmem:[#allocation8] sm:$0xf]
    %v206 = vld [vmem:[#allocation8 + $0x4] sm:$0xf]
    %v207 = vld [vmem:[#allocation8 + $0x8] sm:$0xf]
    %v208 = vld [vmem:[#allocation8 + $0xc] sm:$0xf]
    %v209 = vld [vmem:[#allocation8 + $0x10] sm:$0xf]
    %v210 = vld [vmem:[#allocation8 + $0x14] sm:$0xf]
    %v211 = vld [vmem:[#allocation8 + $0x18] sm:$0xf]
    %v212 = vld [vmem:[#allocation8 + $0x1c] sm:$0xf]
    %v213 = vld [vmem:[#allocation8 + $0x20] sm:$0xf]
    %v214 = vld [vmem:[#allocation8 + $0x24] sm:$0xf]
    %v215 = vld [vmem:[#allocation8 + $0x28] sm:$0xf]
    %v216 = vld [vmem:[#allocation8 + $0x2c] sm:$0xf]
    %v217 = vld [vmem:[#allocation8 + $0x30] sm:$0xf]
    %v218 = vld [vmem:[#allocation8 + $0x34] sm:$0xf]
    %v219 = vld [vmem:[#allocation8 + $0x38] sm:$0xf]
    %v220 = vld [vmem:[#allocation8 + $0x3c] sm:$0xf]
    %v221 = vld [vmem:[%s6] sm:$0x1]
    %v223 = vperm.slane %v221, 0
    %v241 = vunpack.c.l.b16 %v205
    %v242 = vunpack.c.l.b16 %v206
    %v243 = vunpack.c.l.b16 %v207
    %v244 = vunpack.c.l.b16 %v208
    %v245 = vunpack.c.l.b16 %v209
    %v246 = vunpack.c.l.b16 %v210
    %v247 = vunpack.c.l.b16 %v211
    %v248 = vunpack.c.l.b16 %v212
    %v249 = vunpack.c.l.b16 %v213
    %v250 = vunpack.c.l.b16 %v214
    %v251 = vunpack.c.l.b16 %v215
    %v252 = vunpack.c.l.b16 %v216
    %v253 = vunpack.c.l.b16 %v217
    %v254 = vunpack.c.l.b16 %v218
    %v255 = vunpack.c.l.b16 %v219
    %v256 = vunpack.c.l.b16 %v220
    %v257 = vpack.c.b16 %v242, %v241
    %v258 = vpack.c.b16 %v244, %v243
    %v259 = vpack.c.b16 %v246, %v245
    %v260 = vpack.c.b16 %v248, %v247
    %v261 = vpack.c.b16 %v250, %v249
    %v262 = vpack.c.b16 %v252, %v251
    %v263 = vpack.c.b16 %v254, %v253
    %v264 = vpack.c.b16 %v256, %v255
    %273 = vmatpush.bf16.msra.mxu0 %v264
    %274 = vmatpush.bf16.msra.mxu0 %v263
    %275 = vmatpush.bf16.msra.mxu0 %v262
    %276 = vmatpush.bf16.msra.mxu0 %v261
    %277 = vmatpush.bf16.msra.mxu0 %v260
    %278 = vmatpush.bf16.msra.mxu0 %v259
    %279 = vmatpush.bf16.msra.mxu0 %v258
    %280 = vmatpush.bf16.msra.mxu0 %v257
    %281 = vmatmul.bf16.gmra.mxu0 %v204
    %v282 = vpop.f32.mrf.mxu0
    %v283 = vadd.f32 %v223, %v282
    %v284 = vpop.f32.mrf.mxu0
    %285 = vdwg.mxu0
    %v286 = vpack.c.bf16 %v283, %v283
    %287 = vst [vmem:[#allocation10] sm:$0x3] %v286
    // Predicated region
    $region46: #{fused_mlp.1} parent=1 // pred_check
      _
    $region47: #{fused_mlp.1} parent=1 // pred_check_branch
      %289 = sbr.rel (0) target = $region49
    $region48: #{fused_mlp.1} parent=1 // pred_region
      %291 = vsyncadd [#allocation4], 0
      %s293 = sshll.u32 [#allocation10], 4
      %s294 = int_to_ptr.vmem [resolvable:$true] %s293
      %s295 = sshll.u32 %s7, 4
      %s296 = int_to_ptr.hbm [resolvable:$true] %s295
      %298 = dma.vmem_to_hbm [thread:$0]  %s294, 32, %s296, [#allocation4]
    $region49: #{fused_mlp.1} parent=1 // pred_fallthru
      _
    // Predicated region
    $region50: #{fused_mlp.1} parent=1 // pred_check
      _
    $region51: #{fused_mlp.1} parent=1 // pred_check_branch
      %300 = sbr.rel (0) target = $region53
    $region52: #{fused_mlp.1} parent=1 // pred_region
      %302 = dma.done [#allocation4], 32
    $region53: #{fused_mlp.1} parent=1 // pred_fallthru
      _
    %303 = vsyncpa [#allocation3], 1
    %304 = vsyncpa [#allocation6], 1
    %305 = vsyncpa [#allocation9], 1
    %306 = vsyncpa [#allocation4], 1

</llo_original>
